<compile_context>
chip_gen: v6e
topology: v6e:2x2x1
jax: 0.10.0
libtpu: 0.0.40
codegen_flags: <defaults>
</compile_context>

<pallas_src>
import jax
import jax.numpy as jnp
from jax.experimental import pallas as pl
from jax.experimental.pallas import tpu as pltpu


# ---------------------------------------------------------------------------
# Kernels
# ---------------------------------------------------------------------------

def _rows_kernel(x_ref, wt_ref, b_ref, o_ref):
    # x_ref : [tm, seq_len]        batch*channel rows on sublanes
    # wt_ref: [seq_len, pred_len]  resident across the whole grid
    # b_ref : [1, pred_len]        resident across the whole grid
    # o_ref : [tm, pred_len]       pred_len on the lane axis (lane-dense store)
    acc = jnp.dot(x_ref[...], wt_ref[...], preferred_element_type=jnp.float32)
    o_ref[...] = (acc + b_ref[...]).astype(o_ref.dtype)


def _chan_kernel(x_ref, w_ref, b_ref, o_ref):
    # x_ref : [seq_len, tc]        channels on lanes, batch dim squeezed
    # w_ref : [pred_len, seq_len]  resident across the whole grid
    # b_ref : [pred_len, 1]        resident across the whole grid
    # o_ref : [pred_len, tc]
    acc = jnp.dot(w_ref[...], x_ref[...], preferred_element_type=jnp.float32)
    o_ref[...] = (acc + b_ref[...]).astype(o_ref.dtype)


# ---------------------------------------------------------------------------
# Tile selection (no padding: tiles always divide the extent or are full)
# ---------------------------------------------------------------------------

def _pick_row_tile(rows, target=512):
    """Largest multiple-of-8 divisor of `rows` <= target, preferring >=2 steps."""
    divs = [d for d in range(8, min(rows, target) + 1, 8) if rows % d == 0]
    if not divs:
        return rows                      # full-extent block (rows < 8, etc.)
    multi = [d for d in divs if rows // d >= 2]
    return max(multi) if multi else max(divs)


def _pick_chan_tile(C, target=1024):
    """Largest multiple-of-128 divisor of C <= target, else full extent."""
    divs = [d for d in range(128, min(C, target) + 1, 128) if C % d == 0]
    return max(divs) if divs else C


# ---------------------------------------------------------------------------
# Forward
# ---------------------------------------------------------------------------

def ltsf_linear_forward(x, weight, bias):
    """LTSF shared-Linear forward.

    x:      [B, seq_len, C]
    weight: [pred_len, seq_len]   (PyTorch nn.Linear layout)
    bias:   [pred_len]
    returns [B, pred_len, C]
    """
    B, S, C = x.shape
    P = weight.shape[0]
    dtype = x.dtype

    if C < 128:
        # ---- small-channel path: pred_len on lanes -------------------------
        rows = B * C
        xt = jnp.transpose(x, (0, 2, 1)).reshape(rows, S)   # [B*C, S]
        wt = weight.T                                        # [S, P]
        b2 = bias.reshape(1, P)
        tm = _pick_row_tile(rows)
        grid = (rows // tm,)

        out2d = pl.pallas_call(
            _rows_kernel,
            out_shape=jax.ShapeDtypeStruct((rows, P), dtype),
            grid_spec=pltpu.PrefetchScalarGridSpec(
                num_scalar_prefetch=0,
                grid=grid,
                in_specs=[
                    pl.BlockSpec((tm, S), lambda i: (i, 0)),
                    pl.BlockSpec((S, P), lambda i: (0, 0)),
                    pl.BlockSpec((1, P), lambda i: (0, 0)),
                ],
                out_specs=pl.BlockSpec((tm, P), lambda i: (i, 0)),
            ),
            compiler_params=pltpu.CompilerParams(
                dimension_semantics=("parallel",)),
        )(xt, wt, b2)

        return jnp.transpose(out2d.reshape(B, C, P), (0, 2, 1))

    # ---- wide-channel path: channels stay on lanes, zero wrapper copies ----
    tc = _pick_chan_tile(C)
    b2 = bias.reshape(P, 1)
    grid = (B, C // tc)

    return pl.pallas_call(
        _chan_kernel,
        out_shape=jax.ShapeDtypeStruct((B, P, C), dtype),
        grid_spec=pltpu.PrefetchScalarGridSpec(
            num_scalar_prefetch=0,
            grid=grid,
            in_specs=[
                pl.BlockSpec((None, S, tc), lambda b, c: (b, 0, c)),
                pl.BlockSpec((P, S), lambda b, c: (0, 0)),
                pl.BlockSpec((P, 1), lambda b, c: (0, 0)),
            ],
            out_specs=pl.BlockSpec((None, P, tc), lambda b, c: (b, 0, c)),
        ),
        compiler_params=pltpu.CompilerParams(
            dimension_semantics=("parallel", "parallel")),
    )(x, weight, b2)


# TODO(synk): the individual=True branch (per-channel nn.Linear list) is not
# implemented; this covers the shared-Linear ("share") configuration.


if __name__ == "__main__":
    # "Share" config (individual=False): seq_len=32, pred_len=16, enc_in=8, batch=4.
    B, S, P, C = 4, 32, 16, 8

    key = jax.random.PRNGKey(0)
    kx, kw, kb = jax.random.split(key, 3)

    x = jax.random.normal(kx, (B, S, C), dtype=jnp.float32)
    bound = 1.0 / jnp.sqrt(jnp.float32(S))
    weight = jax.random.uniform(kw, (P, S), minval=-bound, maxval=bound,
                                dtype=jnp.float32)
    bias = jax.random.uniform(kb, (P,), minval=-bound, maxval=bound,
                              dtype=jnp.float32)

    y = jax.block_until_ready(ltsf_linear_forward(x, weight, bias))
    y_ref = jnp.einsum("bsc,ps->bpc", x, weight) + bias[None, :, None]
    assert y.shape == (B, P, C)
    assert jnp.allclose(y, y_ref, atol=1e-4, rtol=1e-4)

    # Also exercise the wide-channel (C >= 128) layout path once.
    B2, S2, P2, C2 = 2, 24, 16, 256
    x2 = jax.random.normal(kx, (B2, S2, C2), dtype=jnp.float32)
    bound2 = 1.0 / jnp.sqrt(jnp.float32(S2))
    w2 = jax.random.uniform(kw, (P2, S2), minval=-bound2, maxval=bound2,
                            dtype=jnp.float32)
    b2 = jax.random.uniform(kb, (P2,), minval=-bound2, maxval=bound2,
                            dtype=jnp.float32)
    y2 = jax.block_until_ready(ltsf_linear_forward(x2, w2, b2))
    y2_ref = jnp.einsum("bsc,ps->bpc", x2, w2) + b2[None, :, None]
    assert y2.shape == (B2, P2, C2)
    assert jnp.allclose(y2, y2_ref, atol=1e-4, rtol=1e-4)

    print("KERNEL_OK")
</pallas_src>

<mosaic_0001>
module attributes {stable_mosaic.version = 11 : i64} {
  func.func @_rows_kernel(%arg0: i32, %arg1: memref<16x32xf32, #tpu.memory_space<vmem>>, %arg2: memref<32x16xf32, #tpu.memory_space<vmem>>, %arg3: memref<1x16xf32, #tpu.memory_space<vmem>>, %arg4: memref<16x16xf32, #tpu.memory_space<vmem>>) attributes {dimension_semantics = [#tpu.dimension_semantics<parallel>], iteration_bounds = array<i64: 2>, scalar_prefetch = 0 : i64, scratch_operands = 0 : i64, tpu.core_type = #tpu.core_type<tc>, window_params = [{transform_indices = @transform_0, window_bounds = array<i64: 16, 32>}, {pipeline_mode = #tpu.pipeline_mode<synchronous>, transform_indices = @transform_1, window_bounds = array<i64: 32, 16>}, {pipeline_mode = #tpu.pipeline_mode<synchronous>, transform_indices = @transform_2, window_bounds = array<i64: 1, 16>}, {transform_indices = @transform_3, window_bounds = array<i64: 16, 16>}]} {
    %c0 = arith.constant 0 : index
    %c0_0 = arith.constant 0 : index
    %0 = vector.load %arg1[%c0, %c0_0] : memref<16x32xf32, #tpu.memory_space<vmem>>, vector<16x32xf32>
    %c0_1 = arith.constant 0 : index
    %c0_2 = arith.constant 0 : index
    %1 = vector.load %arg2[%c0_1, %c0_2] : memref<32x16xf32, #tpu.memory_space<vmem>>, vector<32x16xf32>
    %cst = arith.constant dense<0.000000e+00> : vector<16x16xf32>
    %2 = tpu.matmul %0, %1, %cst {dimension_numbers = #tpu.dot_dimension_numbers<[1], [0], [0], [1], [0, 0, 1, 1], [], []>} : vector<16x32xf32>, vector<32x16xf32>, vector<16x16xf32> -> vector<16x16xf32>
    %c0_3 = arith.constant 0 : index
    %c0_4 = arith.constant 0 : index
    %3 = vector.load %arg3[%c0_3, %c0_4] : memref<1x16xf32, #tpu.memory_space<vmem>>, vector<1x16xf32>
    %4 = vector.broadcast %3 : vector<1x16xf32> to vector<16x16xf32>
    %5 = arith.addf %2, %4 : vector<16x16xf32>
    %c0_5 = arith.constant 0 : index
    %c0_6 = arith.constant 0 : index
    %6 = vector.load %arg4[%c0_5, %c0_6] : memref<16x16xf32, #tpu.memory_space<vmem>>, vector<16x16xf32>
    tpu.vector_store %arg4[%c0_5, %c0_6], %5 {strides = array<i32>} : memref<16x16xf32, #tpu.memory_space<vmem>>, vector<16x16xf32>,
    return
  }
  func.func @transform_0(%arg0: i32) -> (i32, i32) {
    %c0_i32 = arith.constant 0 : i32
    %c0_i32_0 = arith.constant 0 : i32
    return %arg0, %c0_i32 : i32, i32
  }
  func.func @transform_1(%arg0: i32) -> (i32, i32) {
    %c0_i32 = arith.constant 0 : i32
    %c0_i32_0 = arith.constant 0 : i32
    %c0_i32_1 = arith.constant 0 : i32
    return %c0_i32, %c0_i32_0 : i32, i32
  }
  func.func @transform_2(%arg0: i32) -> (i32, i32) {
    %c0_i32 = arith.constant 0 : i32
    %c0_i32_0 = arith.constant 0 : i32
    %c0_i32_1 = arith.constant 0 : i32
    return %c0_i32, %c0_i32_0 : i32, i32
  }
  func.func @transform_3(%arg0: i32) -> (i32, i32) {
    %c0_i32 = arith.constant 0 : i32
    %c0_i32_0 = arith.constant 0 : i32
    return %arg0, %c0_i32 : i32, i32
  }
}

</mosaic_0001>

<llo_original>
// kernel: tpu_custom_call.1
$region0: #{tpu_custom_call.1}
  #allocation0 [shape = 'u32[]', space=smem, size = 0x4, offset = 0x4, fixed_abs, tag = 'smem constant byte address 0x4 - core index']
  #allocation1 [shape = 'u32[144,128]{1,0:T(1,128)}', space=vmem, size = 0x12000, scoped, tag = 'internal scratch']
  %s0 = inlined_call_operand.vmem [shape: f32[32,32], index: 0, kind: input, shape index: {}]
  %s1 = inlined_call_operand.vmem [shape: f32[32,16], index: 1, kind: input, shape index: {}]
  %s2 = inlined_call_operand.vmem [shape: f32[1,16], index: 2, kind: input, shape index: {}]
  %s3 = inlined_call_operand.vmem [shape: f32[32,16], index: 3, kind: output, shape index: {}]
  %s4 = sld [smem:[#allocation0]]
  $region45: #{tpu_custom_call.1} parent=0
    _
  %s6 = ssub.s32 1, %s4
  %s7 = scalar_select 0, %s6, %s4
  loop: start=0, step=1, limit=4
  $region2: #{tpu_custom_call.1} parent=0 // loop_pre_header
    _
  $region3: #{tpu_custom_call.1} parent=0 // loop_header
    %s9 = sphi 0, %s13
    %p10 = scmp.ge.s32.totalorder %s9, 4
    %s19 = sphi 0, %s21
    %s22 = sphi 0, %s19
    %s23 = sphi 0, %s22
    %s39 = sphi 0, %s23
    %s43 = sphi 0, %s43
    %s45 = sphi 0, %s43
    %s46 = sphi 0, %s45
    %s60 = sphi 0, %s46
    %s64 = sphi 0, %s64
    %s66 = sphi 0, %s64
    %s67 = sphi 0, %s66
    %s81 = sphi 0, %s67
    %s87 = sphi 0, %s89
    %s90 = sphi 0, %s87
    %s91 = sphi 0, %s90
    %s107 = sphi 0, %s91
  $region4: #{tpu_custom_call.1} parent=0 // loop_header_branch
    %12 = sbr.rel (%p10) target = $region8
  $region5: #{tpu_custom_call.1} parent=0 // loop_body
    %s14 = ssub.s32 %s9, 1
    %s15 = ssub.s32 %s9, 2
    %s16 = sadd.s32 %s9, 1
    %s17 = ssub.s32 %s9, %s16
    %p18 = scmp.eq.s32.totalorder %s17, 0
    %s20 = sadd.s32 %s19, 1
    %s21 = scalar_select %p18, %s19, %s20
    %p24 = pneg %p18
    %p25 = scmp.eq.s32.totalorder %s9, 1
    %p26 = por %p24, %p25
    %p27 = scmp.ne.s32.totalorder %s19, %s22
    %p28 = scmp.eq.s32.totalorder %s9, 0
    %p29 = por %p27, %p28
    %p30 = scmp.ne.s32.totalorder %s19, %s22
    %p31 = scmp.eq.s32.totalorder %s14, 1
    %p32 = por %p30, %p31
    %p33 = scmp.ne.s32.totalorder %s22, %s23
    %p34 = scmp.eq.s32.totalorder %s14, 0
    %p35 = por %p33, %p34
    %p36 = scmp.ne.s32.totalorder %s22, %s23
    %p37 = scmp.eq.s32.totalorder %s15, 1
    %p38 = por %p36, %p37
    %p40 = scmp.ne.s32.totalorder %s23, %s39
    %p41 = scmp.eq.s32.totalorder %s15, 0
    %p42 = por %p40, %p41
    %s44 = sadd.s32 %s43, 1
    %p47 = scmp.eq.s32.totalorder %s9, 1
    %p48 = scmp.ne.s32.totalorder %s43, %s45
    %p49 = scmp.eq.s32.totalorder %s9, 0
    %p50 = por %p48, %p49
    %p51 = scmp.ne.s32.totalorder %s43, %s45
    %p52 = scmp.eq.s32.totalorder %s14, 1
    %p53 = por %p51, %p52
    %p54 = scmp.ne.s32.totalorder %s45, %s46
    %p55 = scmp.eq.s32.totalorder %s14, 0
    %p56 = por %p54, %p55
    %p57 = scmp.ne.s32.totalorder %s45, %s46
    %p58 = scmp.eq.s32.totalorder %s15, 1
    %p59 = por %p57, %p58
    %p61 = scmp.ne.s32.totalorder %s46, %s60
    %p62 = scmp.eq.s32.totalorder %s15, 0
    %p63 = por %p61, %p62
    %s65 = sadd.s32 %s64, 1
    %p68 = scmp.eq.s32.totalorder %s9, 1
    %p69 = scmp.ne.s32.totalorder %s64, %s66
    %p70 = scmp.eq.s32.totalorder %s9, 0
    %p71 = por %p69, %p70
    %p72 = scmp.ne.s32.totalorder %s64, %s66
    %p73 = scmp.eq.s32.totalorder %s14, 1
    %p74 = por %p72, %p73
    %p75 = scmp.ne.s32.totalorder %s66, %s67
    %p76 = scmp.eq.s32.totalorder %s14, 0
    %p77 = por %p75, %p76
    %p78 = scmp.ne.s32.totalorder %s66, %s67
    %p79 = scmp.eq.s32.totalorder %s15, 1
    %p80 = por %p78, %p79
    %p82 = scmp.ne.s32.totalorder %s67, %s81
    %p83 = scmp.eq.s32.totalorder %s15, 0
    %p84 = por %p82, %p83
    %s85 = ssub.s32 %s9, %s16
    %p86 = scmp.eq.s32.totalorder %s85, 0
    %s88 = sadd.s32 %s87, 1
    %s89 = scalar_select %p86, %s87, %s88
    %p92 = pneg %p86
    %p93 = scmp.eq.s32.totalorder %s9, 1
    %p94 = por %p92, %p93
    %p95 = scmp.ne.s32.totalorder %s87, %s90
    %p96 = scmp.eq.s32.totalorder %s9, 0
    %p97 = por %p95, %p96
    %p98 = scmp.ne.s32.totalorder %s87, %s90
    %p99 = scmp.eq.s32.totalorder %s14, 1
    %p100 = por %p98, %p99
    %p101 = scmp.ne.s32.totalorder %s90, %s91
    %p102 = scmp.eq.s32.totalorder %s14, 0
    %p103 = por %p101, %p102
    %p104 = scmp.ne.s32.totalorder %s90, %s91
    %p105 = scmp.eq.s32.totalorder %s15, 1
    %p106 = por %p104, %p105
    %p108 = scmp.ne.s32.totalorder %s91, %s107
    %p109 = scmp.eq.s32.totalorder %s15, 0
    %p110 = por %p108, %p109
    %p111 = scmp.le.s32.totalorder 1, %s9
    %p112 = scmp.lt.s32.totalorder %s9, 3
    %p113 = pnand %p111, %p112
    %p114 = pneg %p113
    // Predicated region
    $region9: #{tpu_custom_call.1} parent=5 // pred_check
      _
    $region10: #{tpu_custom_call.1} parent=5 // pred_check_branch
      %116 = sbr.rel (%p113) target = $region12
    $region11: #{tpu_custom_call.1} parent=5 // pred_region
      %s117 = ssub.s32 %s9, 1
      // Predicated region
      $region13: #{tpu_custom_call.1} parent=11 // pred_check
        %p118 = pneg %p56
      $region14: #{tpu_custom_call.1} parent=11 // pred_check_branch
        %120 = sbr.rel (%p118) target = $region16
      $region15: #{tpu_custom_call.1} parent=11 // pred_region
        _
      $region16: #{tpu_custom_call.1} parent=11 // pred_fallthru
        _
      // Predicated region
      $region17: #{tpu_custom_call.1} parent=11 // pred_check
        %p121 = pneg %p77
      $region18: #{tpu_custom_call.1} parent=11 // pred_check_branch
        %123 = sbr.rel (%p121) target = $region20
      $region19: #{tpu_custom_call.1} parent=11 // pred_region
        _
      $region20: #{tpu_custom_call.1} parent=11 // pred_fallthru
        _
    $region12: #{tpu_custom_call.1} parent=5 // pred_fallthru
      _
    %p124 = scmp.lt.s32.totalorder %s9, 2
    // Predicated region
    $region21: #{tpu_custom_call.1} parent=5 // pred_check
      %p125 = pneg %p124
    $region22: #{tpu_custom_call.1} parent=5 // pred_check_branch
      %127 = sbr.rel (%p125) target = $region24
    $region23: #{tpu_custom_call.1} parent=5 // pred_region
      // Predicated region
      $region25: #{tpu_custom_call.1} parent=23 // pred_check
        %p128 = pneg %p29
      $region26: #{tpu_custom_call.1} parent=23 // pred_check_branch
        %130 = sbr.rel (%p128) target = $region28
      $region27: #{tpu_custom_call.1} parent=23 // pred_region
        %s131 = smul.u32 2, %s9
        %p132 = scmp.lt.s32.totalorder %s131, 3
        %s133 = scalar_select %p132, %s131, 3
        %s134 = smul.addr %s133, 8
        %s135 = scalar_lea.vmem %s0, %s134
        %s136 = smul.u32 2, %s9
      $region28: #{tpu_custom_call.1} parent=23 // pred_fallthru
        _
    $region24: #{tpu_custom_call.1} parent=5 // pred_fallthru
      _
    %p137 = scmp.le.s32.totalorder 1, %s9
    %p138 = scmp.lt.s32.totalorder %s9, 3
    %p139 = pnand %p137, %p138
    %p140 = pneg %p139
    // Predicated region
    $region29: #{tpu_custom_call.1} parent=5 // pred_check
      _
    $region30: #{tpu_custom_call.1} parent=5 // pred_check_branch
      %142 = sbr.rel (%p139) target = $region32
    $region31: #{tpu_custom_call.1} parent=5 // pred_region
      %s143 = ssub.s32 %s9, 1
      %s144 = smul.u32 2, %s14
      %p145 = scmp.lt.s32.totalorder %s144, 3
      %s146 = scalar_select %p145, %s144, 3
      %s147 = smul.addr %s146, 8
      %s148 = scalar_lea.vmem %s0, %s147
      %p149 = pneg %p35
      %p150 = pneg %p32
      %p151 = pneg %p56
      %p152 = pneg %p53
      %p153 = pneg %p77
      %p154 = pneg %p74
      %p155 = pneg %p103
      %p156 = pneg %p100
      %s157 = smul.u32 2, %s14
      %p158 = scmp.lt.s32.totalorder %s157, 3
      %s159 = scalar_select %p158, %s157, 3
      %s160 = smul.addr %s159, 8
      %s161 = scalar_lea.vmem %s3, %s160
      %s162 = smul.u32 2, %s14
      %p163 = scmp.lt.s32.totalorder %s162, 3
      %s164 = scalar_select %p163, %s162, 3
      %s165 = smul.addr %s164, 8
      %s166 = scalar_lea.vmem %s0, %s165
      %s167 = smul.u32 2, %s14
      %s168 = smul.u32 2, %s14
      %p169 = scmp.lt.s32.totalorder %s168, 3
      %s170 = scalar_select %p169, %s168, 3
      %s171 = smul.addr %s170, 8
      %s172 = scalar_lea.vmem %s3, %s171
      %s173 = smul.u32 2, %s14
      %v174 = vld [vmem:[%s166] sm:$0xff]
      %v175 = vld [vmem:[%s166 + $0x8] sm:$0xff]
      %v176 = vld [vmem:[%s1] sm:$0xff]
      %v177 = vld [vmem:[%s1 + $0x8] sm:$0xff]
      %v178 = vld [vmem:[%s1 + $0x10] sm:$0xff]
      %v179 = vld [vmem:[%s1 + $0x18] sm:$0xff]
      %v180 = vld [vmem:[%s2] sm:$0x1]
      %v182 = vlaneseq
      %v183 = vshrl.u32 %v182, 7
      %v184 = vsub.s32 0, %v183
      %v185 = vrot.slane %v180, %v184
      %vm187 = vcmask 261120
      %v189 = vsel %vm187, %v174, 0
      %v192 = vsel %vm187, %v175, 0
      %194 = vmatprep.subr.mxu0 0.0
      %195 = vmatpush1.msra.mxu0 0.0
      %196 = vmatprep.subr.mxu0 0.0
      %197 = vmatpush1.msra.mxu0 0.0
      %198 = vmatprep.subr.mxu0 0.0
      %199 = vmatpush1.msra.mxu0 0.0
      %200 = vmatprep.subr.mxu0 0.0
      %201 = vmatpush1.msra.mxu0 0.0
      %202 = vmatprep.subr.mxu0 0.0
      %203 = vmatpush1.msra.mxu0 0.0
      %204 = vmatprep.subr.mxu0 0.0
      %205 = vmatpush1.msra.mxu0 0.0
      %206 = vmatprep.subr.mxu0 0.0
      %207 = vmatpush1.msra.mxu0 0.0
      %208 = vmatprep.subr.mxu0 0.0
      %209 = vmatpush1.msra.mxu0 0.0
      %210 = vmatprep.subr.mxu0 0.0
      %211 = vmatpush1.msra.mxu0 0.0
      %212 = vmatprep.subr.mxu0 0.0
      %213 = vmatpush1.msra.mxu0 0.0
      %214 = vmatprep.subr.mxu0 0.0
      %215 = vmatpush1.msra.mxu0 0.0
      %216 = vmatprep.subr.mxu0 0.0
      %217 = vmatpush1.msra.mxu0 0.0
      %218 = vmatprep.subr.mxu0 0.0
      %219 = vmatpush1.msra.mxu0 %v179
      %220 = vmatprep.subr.mxu0 0.0
      %221 = vmatpush1.msra.mxu0 %v178
      %222 = vmatprep.subr.mxu0 0.0
      %223 = vmatpush1.msra.mxu0 %v177
      %224 = vmatprep.subr.mxu0 0.0
      %225 = vmatpush1.msra.mxu0 %v176
      %226 = vmatprep.subr.mxu0 0.0
      %227 = vmatpush2.msra.mxu0 0.0
      %228 = vmatprep.subr.mxu0 0.0
      %229 = vmatpush2.msra.mxu0 0.0
      %230 = vmatprep.subr.mxu0 0.0
      %231 = vmatpush2.msra.mxu0 0.0
      %232 = vmatprep.subr.mxu0 0.0
      %233 = vmatpush2.msra.mxu0 0.0
      %234 = vmatprep.subr.mxu0 0.0
      %235 = vmatpush2.msra.mxu0 0.0
      %236 = vmatprep.subr.mxu0 0.0
      %237 = vmatpush2.msra.mxu0 0.0
      %238 = vmatprep.subr.mxu0 0.0
      %239 = vmatpush2.msra.mxu0 0.0
      %240 = vmatprep.subr.mxu0 0.0
      %241 = vmatpush2.msra.mxu0 0.0
      %242 = vmatprep.subr.mxu0 0.0
      %243 = vmatpush2.msra.mxu0 0.0
      %244 = vmatprep.subr.mxu0 0.0
      %245 = vmatpush2.msra.mxu0 0.0
      %246 = vmatprep.subr.mxu0 0.0
      %247 = vmatpush2.msra.mxu0 0.0
      %248 = vmatprep.subr.mxu0 0.0
      %249 = vmatpush2.msra.mxu0 0.0
      %250 = vmatprep.subr.mxu0 0.0
      %251 = vmatpush2.msra.mxu0 0.0
      %252 = vmatprep.subr.mxu0 0.0
      %253 = vmatpush2.msra.mxu0 0.0
      %254 = vmatprep.subr.mxu0 0.0
      %255 = vmatpush2.msra.mxu0 0.0
      %256 = vmatprep.subr.mxu0 0.0
      %257 = vmatpush2.msra.mxu0 0.0
      %258 = vmatprep.mubr.f32.mxu0 0.0
      %259 = vmatmul.mubr.f32.gmra.mxu0 %v189
      %v260 = vpop.f32.mrf.mxu0
      %v261 = vadd.f32 %v185, %v260
      %v262 = vpop.f32.mrf.mxu0
      %263 = vmatprep.mubr.f32.mxu0 0.0
      %264 = vmatmul.mubr.f32.gmra.mxu0 %v192
      %v265 = vpop.f32.mrf.mxu0
      %v266 = vadd.f32 %v185, %v265
      %v267 = vpop.f32.mrf.mxu0
      %268 = vdwg.mxu0
      %vm269 = vcmask 130048
      %270 = vst.msk [vmem:[%s172] sm:$0xff] %vm269, %v261
      %271 = vst.msk [vmem:[%s172 + $0x8] sm:$0xff] %vm269, %v266
      %s272 = smul.u32 2, %s14
      %p273 = scmp.lt.s32.totalorder %s272, 3
      %s274 = scalar_select %p273, %s272, 3
      %s275 = smul.addr %s274, 8
      %s276 = scalar_lea.vmem %s3, %s275
      // Predicated region
      $region33: #{tpu_custom_call.1} parent=31 // pred_check
        %p277 = pneg %p100
      $region34: #{tpu_custom_call.1} parent=31 // pred_check_branch
        %279 = sbr.rel (%p277) target = $region36
      $region35: #{tpu_custom_call.1} parent=31 // pred_region
        %s280 = smul.u32 2, %s14
      $region36: #{tpu_custom_call.1} parent=31 // pred_fallthru
        _
    $region32: #{tpu_custom_call.1} parent=5 // pred_fallthru
      _
    %p281 = scmp.le.s32.totalorder 2, %s9
    // Predicated region
    $region37: #{tpu_custom_call.1} parent=5 // pred_check
      %p282 = pneg %p281
    $region38: #{tpu_custom_call.1} parent=5 // pred_check_branch
      %284 = sbr.rel (%p282) target = $region40
    $region39: #{tpu_custom_call.1} parent=5 // pred_region
      %s285 = ssub.s32 %s9, 2
      // Predicated region
      $region41: #{tpu_custom_call.1} parent=39 // pred_check
        %p286 = pneg %p106
      $region42: #{tpu_custom_call.1} parent=39 // pred_check_branch
        %288 = sbr.rel (%p286) target = $region44
      $region43: #{tpu_custom_call.1} parent=39 // pred_region
        %s289 = smul.u32 2, %s15
        %p290 = scmp.lt.s32.totalorder %s289, 3
        %s291 = scalar_select %p290, %s289, 3
        %s292 = smul.addr %s291, 8
        %s293 = scalar_lea.vmem %s3, %s292
      $region44: #{tpu_custom_call.1} parent=39 // pred_fallthru
        _
    $region40: #{tpu_custom_call.1} parent=5 // pred_fallthru
      _
  $region6: #{tpu_custom_call.1} parent=0 // loop_footer
    %s13 = sadd.s32 1, %s9
  $region7: #{tpu_custom_call.1} parent=0 // loop_footer_branch
    %8 = sbr.rel target = $region3
  $region8: #{tpu_custom_call.1} parent=0 // loop_exit
    _

</llo_original>
